<compile_context>
chip_gen: v6e
topology: v6e:2x2x1
jax: 0.10.0
libtpu: 0.0.40
codegen_flags: <defaults>
</compile_context>

<pallas_src>
import functools

import numpy as np
import jax
import jax.numpy as jnp
from jax import lax
from jax.experimental import pallas as pl
from jax.experimental.pallas import tpu as pltpu


def _round_up(x, m):
    return ((x + m - 1) // m) * m


# ----------------------------- parameter / basis setup (glue) -----------------------------

def _make_basis():
    basis = np.zeros((8, 3, 3), np.float32)
    basis[0, 0, 2] = 1.0
    basis[1, 1, 2] = 1.0
    basis[2, 0, 1] = 1.0
    basis[3, 1, 0] = 1.0
    basis[4, 0, 0], basis[4, 1, 1] = 1.0, -1.0
    basis[5, 1, 1], basis[5, 2, 2] = -1.0, 1.0
    basis[6, 2, 0] = 1.0
    basis[7, 2, 1] = 1.0
    return jnp.asarray(basis)


def mexp(basis, v):
    """Exact replica of Homography.Mexp (including its cumulative n_fact quirk).

    3x3-only glue compute; too small to benefit from a kernel.
    """
    M = (v * basis).sum(axis=0)
    A = jnp.eye(3, dtype=jnp.float32)
    Hm = jnp.eye(3, dtype=jnp.float32)
    n_fact = 1
    for i in range(20):
        A = M @ A
        n_fact = max(i, 1) * n_fact
        A = A / jnp.float32(n_fact)   # n_fact <= 19!, representable in f32
        Hm = Hm + A
    return Hm / Hm[2, 2]


# ----------------------------------- Pallas kernel -----------------------------------

def _homography_sample_kernel(h_ref, coords_ref, img_ref, out_ref, *,
                              bc, r_pad, k_dim, contract_x, off_x, off_y):
    """h_ref:      SMEM (9,)                 f32  row-major 3x3 H, rows 0/1 pre-scaled by W/2, H/2
       coords_ref: VMEM (2, Pt)              f32  normalized (x, y) of this tile's output pixels
       img_ref:    VMEM (bc*r_pad, k_dim)    f32  image, larger spatial axis on the lanes (K)
       out_ref:    VMEM (bc, Pt)             f32  sampled output tile
    """
    pt = out_ref.shape[-1]

    h00 = h_ref[0]; h01 = h_ref[1]; h02 = h_ref[2]
    h10 = h_ref[3]; h11 = h_ref[4]; h12 = h_ref[5]
    h20 = h_ref[6]; h21 = h_ref[7]; h22 = h_ref[8]

    coords = coords_ref[...]          # (2, Pt)
    xx = coords[0:1, :]
    yy = coords[1:2, :]

    # Projective warp; unnormalization scales are folded into H rows 0/1, so only the
    # (W-1)/2, (H-1)/2 offsets remain after the divide.
    gz = h20 * xx + h21 * yy + h22
    inv_gz = 1.0 / gz                  # exact divide to preserve 1e-4 parity
    ix = (h00 * xx + h01 * yy + h02) * inv_gz + off_x     # (1, Pt) source column
    iy = (h10 * xx + h11 * yy + h12) * inv_gz + off_y     # (1, Pt) source row

    ck = ix if contract_x else iy      # coordinate along the contracted (MXU) axis
    cr = iy if contract_x else ix      # coordinate along the reduced (stage-2) axis

    # Hat-function bilinear weights (zeros padding falls out: out-of-range taps get 0).
    kk = lax.broadcasted_iota(jnp.int32, (k_dim, pt), 0).astype(jnp.float32)
    kr = lax.broadcasted_iota(jnp.int32, (r_pad, pt), 0).astype(jnp.float32)
    wK = jnp.maximum(0.0, 1.0 - jnp.abs(kk - ck))          # (k_dim, Pt)
    wR = jnp.maximum(0.0, 1.0 - jnp.abs(kr - cr))          # (r_pad, Pt); padded rows hit zero image rows

    # Stage 1 (MXU): contract the larger spatial axis for every (bc, r) image row.
    t = jnp.dot(img_ref[...], wK, preferred_element_type=jnp.float32)   # (bc*r_pad, Pt)

    # Stage 2 (VPU mul + sublane reduce): per bc slab, weight by wR, reduce, store directly.
    for b in range(bc):                                    # bc = B*C, small & static
        tb = t[b * r_pad:(b + 1) * r_pad, :]               # tile-aligned slice (r_pad % 8 == 0)
        out_ref[pl.ds(b, 1), :] = jnp.sum(tb * wR, axis=0, keepdims=True)


# ----------------------------------- wrapper -----------------------------------

@functools.partial(jax.jit, static_argnames=("size",))
def homography_forward(I, v, size=None):
    """I: (B, C, Hin, Win) f32 (NCHW, like PyTorch).  Returns (J, H)."""
    basis = _make_basis()
    Hm = mexp(basis, v)

    B, C, hin, win = I.shape
    if size is None:
        hout, wout = hin, win
    else:
        hout, wout = size
    bc = B * C

    # Output-pixel coordinate grid: exact torch.linspace / meshgrid('xy') semantics.
    x = jnp.linspace(-1.0, 1.0, wout, dtype=jnp.float32)
    y = jnp.linspace(-1.0, 1.0, hout, dtype=jnp.float32)
    xx, yy = jnp.meshgrid(x, y, indexing="xy")             # (hout, wout), p = r*wout + c
    P = hout * wout

    # Lane-dense output tiles; guarantee >= 2 tiles when P > 128 (feeds both v7x TCs),
    # cap at 2048 lanes to amortize per-step overhead while bounding vreg/VMEM pressure.
    P128 = _round_up(P, 128)
    if P128 <= 128:
        pt = 128
    else:
        pt = min(2048, _round_up(P128 // 2, 128))
    P_pad = _round_up(P, pt)

    # Single (2, P_pad) coordinate stream (edge-pad the discarded lanes).
    coords = jnp.stack([xx.reshape(P), yy.reshape(P)], axis=0)
    coords = jnp.pad(coords, ((0, 0), (0, P_pad - P)), mode="edge")

    # Put the larger spatial axis on the MXU contraction (K); pad the other axis (R) per
    # bc slab to a multiple of 8 so stage-2 slab slices are tile-aligned and free.
    contract_x = win >= hin
    if contract_x:
        k_dim, r_dim = win, hin
        img3 = I.astype(jnp.float32).reshape(bc, hin, win)                  # (bc, R, K)
    else:
        k_dim, r_dim = hin, win
        img3 = I.astype(jnp.float32).reshape(bc, hin, win).transpose(0, 2, 1)
    r_pad = _round_up(r_dim, 8)
    img3 = jnp.pad(img3, ((0, 0), (0, r_pad - r_dim), (0, 0)))
    img2d = img3.reshape(bc * r_pad, k_dim)
    rows_pad = bc * r_pad

    # Fold align_corners=False unnormalization scales (W/2, H/2) into H rows 0/1.
    scale = jnp.array([[0.5 * win], [0.5 * hin], [1.0]], dtype=jnp.float32)
    h_flat = (Hm.astype(jnp.float32) * scale).reshape(9)

    kern = functools.partial(
        _homography_sample_kernel,
        bc=bc, r_pad=r_pad, k_dim=k_dim, contract_x=contract_x,
        off_x=0.5 * (win - 1), off_y=0.5 * (hin - 1))

    out_flat = pl.pallas_call(
        kern,
        out_shape=jax.ShapeDtypeStruct((bc, P_pad), jnp.float32),
        grid=(P_pad // pt,),
        in_specs=[
            pl.BlockSpec(memory_space=pltpu.MemorySpace.SMEM),        # 3x3 H as 9 scalars
            pl.BlockSpec((2, pt), lambda i: (0, i)),                  # (x, y) coordinate tile
            pl.BlockSpec((rows_pad, k_dim), lambda i: (0, 0)),        # image (VMEM-resident)
        ],
        out_specs=pl.BlockSpec((bc, pt), lambda i: (0, i)),
        compiler_params=pltpu.CompilerParams(
            dimension_semantics=("parallel",),   # independent output tiles; megacore on v7x
            vmem_limit_bytes=32 * 1024 * 1024,
        ),
    )(h_flat, coords, img2d)

    J = out_flat[:, :P].reshape(B, C, hout, wout)
    return J, Hm


# ----------------------------------- reference (pure JAX) -----------------------------------

def _grid_sample_ref(I, Hm):
    B, C, hin, win = I.shape
    hout, wout = hin, win
    x = jnp.linspace(-1.0, 1.0, wout)
    y = jnp.linspace(-1.0, 1.0, hout)
    xx, yy = jnp.meshgrid(x, y, indexing="xy")
    gz = Hm[2, 0] * xx + Hm[2, 1] * yy + Hm[2, 2]
    gx = (Hm[0, 0] * xx + Hm[0, 1] * yy + Hm[0, 2]) / gz
    gy = (Hm[1, 0] * xx + Hm[1, 1] * yy + Hm[1, 2]) / gz
    ix = ((gx + 1.0) * win - 1.0) * 0.5
    iy = ((gy + 1.0) * hin - 1.0) * 0.5
    x0 = jnp.floor(ix).astype(jnp.int32); x1 = x0 + 1
    y0 = jnp.floor(iy).astype(jnp.int32); y1 = y0 + 1
    wx1 = ix - x0; wx0 = 1.0 - wx1
    wy1 = iy - y0; wy0 = 1.0 - wy1

    def gather(cx, cy, w):
        inb = ((cx >= 0) & (cx < win) & (cy >= 0) & (cy < hin)).astype(I.dtype)
        cxc = jnp.clip(cx, 0, win - 1)
        cyc = jnp.clip(cy, 0, hin - 1)
        vals = I[:, :, cyc, cxc]
        return vals * (w * inb)[None, None]

    return (gather(x0, y0, wx0 * wy0) + gather(x1, y0, wx1 * wy0) +
            gather(x0, y1, wx0 * wy1) + gather(x1, y1, wx1 * wy1))


# ----------------------------------- main -----------------------------------

if __name__ == "__main__":
    key = jax.random.PRNGKey(0)
    k_img, k_v = jax.random.split(key)

    # B=1 because the original module builds a batch-1 sampling grid.
    B, C, Hh, Ww = 1, 3, 16, 16
    I = jax.random.normal(k_img, (B, C, Hh, Ww), dtype=jnp.float32)
    # nn.Parameter v is zero-initialized in __init__; use a small deterministic
    # perturbation so the homography is non-trivial.
    v = 0.05 * jax.random.normal(k_v, (8, 1, 1), dtype=jnp.float32)

    J, Hm = homography_forward(I, v)
    J = jax.block_until_ready(J)
    Hm = jax.block_until_ready(Hm)

    # Self-check against a pure-JAX reference of the same forward pass.
    J_ref = _grid_sample_ref(I, Hm)
    assert J.shape == (B, C, Hh, Ww) and Hm.shape == (3, 3)
    assert np.allclose(np.asarray(J), np.asarray(J_ref), atol=1e-4, rtol=1e-4)

    print("KERNEL_OK")
</pallas_src>

<mosaic_0001>
module attributes {stable_mosaic.version = 11 : i64} {
  func.func @_homography_sample_kernel(%arg0: i32, %arg1: memref<9xf32, #tpu.memory_space<smem>>, %arg2: memref<2x128xf32, #tpu.memory_space<vmem>>, %arg3: memref<48x16xf32, #tpu.memory_space<vmem>>, %arg4: memref<3x128xf32, #tpu.memory_space<vmem>>) attributes {dimension_semantics = [#tpu.dimension_semantics<parallel>], iteration_bounds = array<i64: 2>, scalar_prefetch = 0 : i64, scratch_operands = 0 : i64, tpu.core_type = #tpu.core_type<tc>, window_params = [{transform_indices = @transform_0, window_bounds = array<i64: 9>}, {transform_indices = @transform_1, window_bounds = array<i64: 2, 128>}, {pipeline_mode = #tpu.pipeline_mode<synchronous>, transform_indices = @transform_2, window_bounds = array<i64: 48, 16>}, {transform_indices = @transform_3, window_bounds = array<i64: 3, 128>}]} {
    %c0 = arith.constant 0 : index
    %0 = memref.load %arg1[%c0] : memref<9xf32, #tpu.memory_space<smem>>
    %c1 = arith.constant 1 : index
    %1 = memref.load %arg1[%c1] : memref<9xf32, #tpu.memory_space<smem>>
    %c2 = arith.constant 2 : index
    %2 = memref.load %arg1[%c2] : memref<9xf32, #tpu.memory_space<smem>>
    %c3 = arith.constant 3 : index
    %3 = memref.load %arg1[%c3] : memref<9xf32, #tpu.memory_space<smem>>
    %c4 = arith.constant 4 : index
    %4 = memref.load %arg1[%c4] : memref<9xf32, #tpu.memory_space<smem>>
    %c5 = arith.constant 5 : index
    %5 = memref.load %arg1[%c5] : memref<9xf32, #tpu.memory_space<smem>>
    %c6 = arith.constant 6 : index
    %6 = memref.load %arg1[%c6] : memref<9xf32, #tpu.memory_space<smem>>
    %c7 = arith.constant 7 : index
    %7 = memref.load %arg1[%c7] : memref<9xf32, #tpu.memory_space<smem>>
    %c8 = arith.constant 8 : index
    %8 = memref.load %arg1[%c8] : memref<9xf32, #tpu.memory_space<smem>>
    %c0_0 = arith.constant 0 : index
    %c0_1 = arith.constant 0 : index
    %9 = vector.load %arg2[%c0_0, %c0_1] : memref<2x128xf32, #tpu.memory_space<vmem>>, vector<2x128xf32>
    %10 = vector.extract_strided_slice %9 {offsets = [0, 0], sizes = [1, 128], strides = [1, 1]} : vector<2x128xf32> to vector<1x128xf32>
    %11 = vector.extract_strided_slice %9 {offsets = [1, 0], sizes = [1, 128], strides = [1, 1]} : vector<2x128xf32> to vector<1x128xf32>
    %12 = vector.broadcast %6 : f32 to vector<1x128xf32>
    %13 = arith.mulf %12, %10 : vector<1x128xf32>
    %14 = vector.broadcast %7 : f32 to vector<1x128xf32>
    %15 = arith.mulf %14, %11 : vector<1x128xf32>
    %16 = arith.addf %13, %15 : vector<1x128xf32>
    %17 = vector.broadcast %8 : f32 to vector<1x128xf32>
    %18 = arith.addf %16, %17 : vector<1x128xf32>
    %cst = arith.constant 1.000000e+00 : f32
    %19 = vector.broadcast %cst : f32 to vector<1x128xf32>
    %20 = arith.divf %19, %18 : vector<1x128xf32>
    %21 = vector.broadcast %0 : f32 to vector<1x128xf32>
    %22 = arith.mulf %21, %10 : vector<1x128xf32>
    %23 = vector.broadcast %1 : f32 to vector<1x128xf32>
    %24 = arith.mulf %23, %11 : vector<1x128xf32>
    %25 = arith.addf %22, %24 : vector<1x128xf32>
    %26 = vector.broadcast %2 : f32 to vector<1x128xf32>
    %27 = arith.addf %25, %26 : vector<1x128xf32>
    %28 = arith.mulf %27, %20 : vector<1x128xf32>
    %cst_2 = arith.constant 7.500000e+00 : f32
    %29 = vector.broadcast %cst_2 : f32 to vector<1x128xf32>
    %30 = arith.addf %28, %29 : vector<1x128xf32>
    %31 = vector.broadcast %3 : f32 to vector<1x128xf32>
    %32 = arith.mulf %31, %10 : vector<1x128xf32>
    %33 = vector.broadcast %4 : f32 to vector<1x128xf32>
    %34 = arith.mulf %33, %11 : vector<1x128xf32>
    %35 = arith.addf %32, %34 : vector<1x128xf32>
    %36 = vector.broadcast %5 : f32 to vector<1x128xf32>
    %37 = arith.addf %35, %36 : vector<1x128xf32>
    %38 = arith.mulf %37, %20 : vector<1x128xf32>
    %cst_3 = arith.constant 7.500000e+00 : f32
    %39 = vector.broadcast %cst_3 : f32 to vector<1x128xf32>
    %40 = arith.addf %38, %39 : vector<1x128xf32>
    %41 = tpu.iota {dimensions = array<i32: 0>} : vector<16x128xi32>
    %42 = arith.sitofp %41 : vector<16x128xi32> to vector<16x128xf32>
    %43 = tpu.iota {dimensions = array<i32: 0>} : vector<16x128xi32>
    %44 = arith.sitofp %43 : vector<16x128xi32> to vector<16x128xf32>
    %45 = vector.broadcast %30 : vector<1x128xf32> to vector<16x128xf32>
    %46 = arith.subf %42, %45 : vector<16x128xf32>
    %47 = math.absf %46 : vector<16x128xf32>
    %cst_4 = arith.constant 1.000000e+00 : f32
    %48 = vector.broadcast %cst_4 : f32 to vector<16x128xf32>
    %49 = arith.subf %48, %47 : vector<16x128xf32>
    %cst_5 = arith.constant 0.000000e+00 : f32
    %50 = vector.broadcast %cst_5 : f32 to vector<16x128xf32>
    %51 = arith.maximumf %50, %49 : vector<16x128xf32>
    %52 = vector.broadcast %40 : vector<1x128xf32> to vector<16x128xf32>
    %53 = arith.subf %44, %52 : vector<16x128xf32>
    %54 = math.absf %53 : vector<16x128xf32>
    %cst_6 = arith.constant 1.000000e+00 : f32
    %55 = vector.broadcast %cst_6 : f32 to vector<16x128xf32>
    %56 = arith.subf %55, %54 : vector<16x128xf32>
    %cst_7 = arith.constant 0.000000e+00 : f32
    %57 = vector.broadcast %cst_7 : f32 to vector<16x128xf32>
    %58 = arith.maximumf %57, %56 : vector<16x128xf32>
    %c0_8 = arith.constant 0 : index
    %c0_9 = arith.constant 0 : index
    %59 = vector.load %arg3[%c0_8, %c0_9] : memref<48x16xf32, #tpu.memory_space<vmem>>, vector<48x16xf32>
    %cst_10 = arith.constant dense<0.000000e+00> : vector<48x128xf32>
    %60 = tpu.matmul %59, %51, %cst_10 {dimension_numbers = #tpu.dot_dimension_numbers<[1], [0], [0], [1], [0, 0, 1, 1], [], []>} : vector<48x16xf32>, vector<16x128xf32>, vector<48x128xf32> -> vector<48x128xf32>
    %61 = vector.extract_strided_slice %60 {offsets = [0, 0], sizes = [16, 128], strides = [1, 1]} : vector<48x128xf32> to vector<16x128xf32>
    %62 = arith.mulf %61, %58 : vector<16x128xf32>
    %cst_11 = arith.constant dense<0.000000e+00> : vector<128xf32>
    %63 = vector.multi_reduction <add>, %62, %cst_11 [0] : vector<16x128xf32> to vector<128xf32>
    %64 = vector.shape_cast %63 : vector<128xf32> to vector<1x128xf32>
    %c0_12 = arith.constant 0 : index
    %c0_13 = arith.constant 0 : index
    %65 = vector.load %arg4[%c0_12, %c0_13] : memref<3x128xf32, #tpu.memory_space<vmem>>, vector<1x128xf32>
    tpu.vector_store %arg4[%c0_12, %c0_13], %64 {strides = array<i32>} : memref<3x128xf32, #tpu.memory_space<vmem>>, vector<1x128xf32>,
    %66 = vector.extract_strided_slice %60 {offsets = [16, 0], sizes = [16, 128], strides = [1, 1]} : vector<48x128xf32> to vector<16x128xf32>
    %67 = arith.mulf %66, %58 : vector<16x128xf32>
    %cst_14 = arith.constant dense<0.000000e+00> : vector<128xf32>
    %68 = vector.multi_reduction <add>, %67, %cst_14 [0] : vector<16x128xf32> to vector<128xf32>
    %69 = vector.shape_cast %68 : vector<128xf32> to vector<1x128xf32>
    %c1_15 = arith.constant 1 : index
    %c0_16 = arith.constant 0 : index
    %70 = vector.load %arg4[%c1_15, %c0_16] : memref<3x128xf32, #tpu.memory_space<vmem>>, vector<1x128xf32>
    tpu.vector_store %arg4[%c1_15, %c0_16], %69 {strides = array<i32>} : memref<3x128xf32, #tpu.memory_space<vmem>>, vector<1x128xf32>,
    %71 = vector.extract_strided_slice %60 {offsets = [32, 0], sizes = [16, 128], strides = [1, 1]} : vector<48x128xf32> to vector<16x128xf32>
    %72 = arith.mulf %71, %58 : vector<16x128xf32>
    %cst_17 = arith.constant dense<0.000000e+00> : vector<128xf32>
    %73 = vector.multi_reduction <add>, %72, %cst_17 [0] : vector<16x128xf32> to vector<128xf32>
    %74 = vector.shape_cast %73 : vector<128xf32> to vector<1x128xf32>
    %c2_18 = arith.constant 2 : index
    %c0_19 = arith.constant 0 : index
    %75 = vector.load %arg4[%c2_18, %c0_19] : memref<3x128xf32, #tpu.memory_space<vmem>>, vector<1x128xf32>
    tpu.vector_store %arg4[%c2_18, %c0_19], %74 {strides = array<i32>} : memref<3x128xf32, #tpu.memory_space<vmem>>, vector<1x128xf32>,
    return
  }
  func.func @transform_0(%arg0: i32) -> i32 {
    %c0_i32 = arith.constant 0 : i32
    %c0_i32_0 = arith.constant 0 : i32
    return %c0_i32 : i32
  }
  func.func @transform_1(%arg0: i32) -> (i32, i32) {
    %c0_i32 = arith.constant 0 : i32
    %c0_i32_0 = arith.constant 0 : i32
    return %c0_i32, %arg0 : i32, i32
  }
  func.func @transform_2(%arg0: i32) -> (i32, i32) {
    %c0_i32 = arith.constant 0 : i32
    %c0_i32_0 = arith.constant 0 : i32
    %c0_i32_1 = arith.constant 0 : i32
    return %c0_i32, %c0_i32_0 : i32, i32
  }
  func.func @transform_3(%arg0: i32) -> (i32, i32) {
    %c0_i32 = arith.constant 0 : i32
    %c0_i32_0 = arith.constant 0 : i32
    return %c0_i32, %arg0 : i32, i32
  }
}

</mosaic_0001>

<llo_original>
// kernel: homography_forward.1
$region0: #{homography_forward.1}
  #allocation0 [shape = 'u32[]', space=smem, size = 0x4, offset = 0x4, fixed_abs, tag = 'smem constant byte address 0x4 - core index']
  #allocation1 [shape = 'u32[144,128]{1,0:T(1,128)}', space=vmem, size = 0x12000, scoped, tag = 'internal scratch']
  %s0 = inlined_call_operand.vmem [shape: f32[9], index: 0, kind: input, shape index: {}]
  %s1 = inlined_call_operand.vmem [shape: f32[2,256], index: 1, kind: input, shape index: {}]
  %s2 = inlined_call_operand.vmem [shape: f32[48,16], index: 2, kind: input, shape index: {}]
  %s3 = inlined_call_operand.vmem [shape: f32[3,256], index: 3, kind: output, shape index: {}]
  %s4 = sld [smem:[#allocation0]]
  $region49: #{homography_forward.1} parent=0
    _
  %s6 = ssub.s32 1, %s4
  %s7 = scalar_select 0, %s6, %s4
  $region1: #{homography_forward.1} parent=0
    #allocation2 [shape = 'u8[512]{0}', space=smem, size = 0x200, scoped, tag = 'input window, operand 0, single buffered']
    #allocation3 [shape = 's32[2]{0}', space=sflag, size = 0x8, scoped, tag = 'scoped memory for homography_forward.1']
    %8 = vsyncpa [#allocation3], 0
    loop: start=0, step=1, limit=4
    $region2: #{homography_forward.1} parent=1 // loop_pre_header
      _
    $region3: #{homography_forward.1} parent=1 // loop_header
      %s10 = sphi 0, %s14
      %p11 = scmp.ge.s32.totalorder %s10, 4
      %s18 = sphi 0, %s18
      %s20 = sphi 0, %s18
      %s21 = sphi 0, %s20
      %s35 = sphi 0, %s21
      %s41 = sphi 0, %s43
      %s44 = sphi 0, %s41
      %s45 = sphi 0, %s44
      %s61 = sphi 0, %s45
      %s65 = sphi 0, %s65
      %s67 = sphi 0, %s65
      %s68 = sphi 0, %s67
      %s82 = sphi 0, %s68
      %s88 = sphi 0, %s90
      %s91 = sphi 0, %s88
      %s92 = sphi 0, %s91
      %s108 = sphi 0, %s92
    $region4: #{homography_forward.1} parent=1 // loop_header_branch
      %13 = sbr.rel (%p11) target = $region8
    $region5: #{homography_forward.1} parent=1 // loop_body
      %s15 = ssub.s32 %s10, 1
      %s16 = ssub.s32 %s10, 2
      %s17 = sadd.s32 %s10, 1
      %s19 = sadd.s32 %s18, 1
      %p22 = scmp.eq.s32.totalorder %s10, 1
      %p23 = scmp.ne.s32.totalorder %s18, %s20
      %p24 = scmp.eq.s32.totalorder %s10, 0
      %p25 = por %p23, %p24
      %p26 = scmp.ne.s32.totalorder %s18, %s20
      %p27 = scmp.eq.s32.totalorder %s15, 1
      %p28 = por %p26, %p27
      %p29 = scmp.ne.s32.totalorder %s20, %s21
      %p30 = scmp.eq.s32.totalorder %s15, 0
      %p31 = por %p29, %p30
      %p32 = scmp.ne.s32.totalorder %s20, %s21
      %p33 = scmp.eq.s32.totalorder %s16, 1
      %p34 = por %p32, %p33
      %p36 = scmp.ne.s32.totalorder %s21, %s35
      %p37 = scmp.eq.s32.totalorder %s16, 0
      %p38 = por %p36, %p37
      %s39 = ssub.s32 %s10, %s17
      %p40 = scmp.eq.s32.totalorder %s39, 0
      %s42 = sadd.s32 %s41, 1
      %s43 = scalar_select %p40, %s41, %s42
      %p46 = pneg %p40
      %p47 = scmp.eq.s32.totalorder %s10, 1
      %p48 = por %p46, %p47
      %p49 = scmp.ne.s32.totalorder %s41, %s44
      %p50 = scmp.eq.s32.totalorder %s10, 0
      %p51 = por %p49, %p50
      %p52 = scmp.ne.s32.totalorder %s41, %s44
      %p53 = scmp.eq.s32.totalorder %s15, 1
      %p54 = por %p52, %p53
      %p55 = scmp.ne.s32.totalorder %s44, %s45
      %p56 = scmp.eq.s32.totalorder %s15, 0
      %p57 = por %p55, %p56
      %p58 = scmp.ne.s32.totalorder %s44, %s45
      %p59 = scmp.eq.s32.totalorder %s16, 1
      %p60 = por %p58, %p59
      %p62 = scmp.ne.s32.totalorder %s45, %s61
      %p63 = scmp.eq.s32.totalorder %s16, 0
      %p64 = por %p62, %p63
      %s66 = sadd.s32 %s65, 1
      %p69 = scmp.eq.s32.totalorder %s10, 1
      %p70 = scmp.ne.s32.totalorder %s65, %s67
      %p71 = scmp.eq.s32.totalorder %s10, 0
      %p72 = por %p70, %p71
      %p73 = scmp.ne.s32.totalorder %s65, %s67
      %p74 = scmp.eq.s32.totalorder %s15, 1
      %p75 = por %p73, %p74
      %p76 = scmp.ne.s32.totalorder %s67, %s68
      %p77 = scmp.eq.s32.totalorder %s15, 0
      %p78 = por %p76, %p77
      %p79 = scmp.ne.s32.totalorder %s67, %s68
      %p80 = scmp.eq.s32.totalorder %s16, 1
      %p81 = por %p79, %p80
      %p83 = scmp.ne.s32.totalorder %s68, %s82
      %p84 = scmp.eq.s32.totalorder %s16, 0
      %p85 = por %p83, %p84
      %s86 = ssub.s32 %s10, %s17
      %p87 = scmp.eq.s32.totalorder %s86, 0
      %s89 = sadd.s32 %s88, 1
      %s90 = scalar_select %p87, %s88, %s89
      %p93 = pneg %p87
      %p94 = scmp.eq.s32.totalorder %s10, 1
      %p95 = por %p93, %p94
      %p96 = scmp.ne.s32.totalorder %s88, %s91
      %p97 = scmp.eq.s32.totalorder %s10, 0
      %p98 = por %p96, %p97
      %p99 = scmp.ne.s32.totalorder %s88, %s91
      %p100 = scmp.eq.s32.totalorder %s15, 1
      %p101 = por %p99, %p100
      %p102 = scmp.ne.s32.totalorder %s91, %s92
      %p103 = scmp.eq.s32.totalorder %s15, 0
      %p104 = por %p102, %p103
      %p105 = scmp.ne.s32.totalorder %s91, %s92
      %p106 = scmp.eq.s32.totalorder %s16, 1
      %p107 = por %p105, %p106
      %p109 = scmp.ne.s32.totalorder %s92, %s108
      %p110 = scmp.eq.s32.totalorder %s16, 0
      %p111 = por %p109, %p110
      %p112 = scmp.le.s32.totalorder 1, %s10
      %p113 = scmp.lt.s32.totalorder %s10, 3
      %p114 = pnand %p112, %p113
      %p115 = pneg %p114
      // Predicated region
      $region9: #{homography_forward.1} parent=5 // pred_check
        _
      $region10: #{homography_forward.1} parent=5 // pred_check_branch
        %117 = sbr.rel (%p114) target = $region12
      $region11: #{homography_forward.1} parent=5 // pred_region
        %s118 = ssub.s32 %s10, 1
        // Predicated region
        $region13: #{homography_forward.1} parent=11 // pred_check
          %p119 = pneg %p31
        $region14: #{homography_forward.1} parent=11 // pred_check_branch
          %121 = sbr.rel (%p119) target = $region16
        $region15: #{homography_forward.1} parent=11 // pred_region
          %s123 = ssub.s32 16, 16
          %124 = vsyncadd [#allocation3], %s123
          %s126 = sshll.u32 %s0, 4
          %s127 = int_to_ptr.vmem [resolvable:$true] %s126
          %129 = dma.vmem_to_smem %s127, 16, [#allocation2], [#allocation3]
        $region16: #{homography_forward.1} parent=11 // pred_fallthru
          _
        // Predicated region
        $region17: #{homography_forward.1} parent=11 // pred_check
          %p130 = pneg %p78
        $region18: #{homography_forward.1} parent=11 // pred_check_branch
          %132 = sbr.rel (%p130) target = $region20
        $region19: #{homography_forward.1} parent=11 // pred_region
          _
        $region20: #{homography_forward.1} parent=11 // pred_fallthru
          _
      $region12: #{homography_forward.1} parent=5 // pred_fallthru
        _
      %p133 = scmp.lt.s32.totalorder %s10, 2
      // Predicated region
      $region21: #{homography_forward.1} parent=5 // pred_check
        %p134 = pneg %p133
      $region22: #{homography_forward.1} parent=5 // pred_check_branch
        %136 = sbr.rel (%p134) target = $region24
      $region23: #{homography_forward.1} parent=5 // pred_region
        // Predicated region
        $region25: #{homography_forward.1} parent=23 // pred_check
          %p137 = pneg %p51
        $region26: #{homography_forward.1} parent=23 // pred_check_branch
          %139 = sbr.rel (%p137) target = $region28
        $region27: #{homography_forward.1} parent=23 // pred_region
          %p140 = scmp.lt.s32.totalorder %s10, 1
          %s141 = scalar_select %p140, %s10, 1
          %s142 = smul.addr %s141, 2
          %s143 = scalar_lea.vmem %s1, %s142
        $region28: #{homography_forward.1} parent=23 // pred_fallthru
          _
      $region24: #{homography_forward.1} parent=5 // pred_fallthru
        _
      %p144 = scmp.le.s32.totalorder 1, %s10
      %p145 = scmp.lt.s32.totalorder %s10, 3
      %p146 = pnand %p144, %p145
      %p147 = pneg %p146
      // Predicated region
      $region29: #{homography_forward.1} parent=5 // pred_check
        _
      $region30: #{homography_forward.1} parent=5 // pred_check_branch
        %149 = sbr.rel (%p146) target = $region32
      $region31: #{homography_forward.1} parent=5 // pred_region
        %s150 = ssub.s32 %s10, 1
        // Predicated region
        $region33: #{homography_forward.1} parent=31 // pred_check
          %p151 = pneg %p31
        $region34: #{homography_forward.1} parent=31 // pred_check_branch
          %153 = sbr.rel (%p151) target = $region36
        $region35: #{homography_forward.1} parent=31 // pred_region
          %154 = dma.done [#allocation3], 16
        $region36: #{homography_forward.1} parent=31 // pred_fallthru
          _
        %155 = sfence
        %p156 = pneg %p31
        %p157 = pneg %p28
        %p158 = scmp.lt.s32.totalorder %s15, 1
        %s159 = scalar_select %p158, %s15, 1
        %s160 = smul.addr %s159, 2
        %s161 = scalar_lea.vmem %s1, %s160
        %p162 = pneg %p57
        %p163 = pneg %p54
        %p164 = pneg %p78
        %p165 = pneg %p75
        %p166 = pneg %p104
        %p167 = pneg %p101
        %p168 = scmp.lt.s32.totalorder %s15, 1
        %s169 = scalar_select %p168, %s15, 1
        %s170 = smul.addr %s169, 4
        %s171 = scalar_lea.vmem %s3, %s170
        %p172 = scmp.lt.s32.totalorder %s15, 1
        %s173 = scalar_select %p172, %s15, 1
        %s174 = smul.addr %s173, 2
        %s175 = scalar_lea.vmem %s1, %s174
        %p176 = scmp.lt.s32.totalorder %s15, 1
        %s177 = scalar_select %p176, %s15, 1
        %s178 = smul.addr %s177, 4
        %s179 = scalar_lea.vmem %s3, %s178
        %s180 = sld [smem:[#allocation2]]
        %s181 = sld [smem:[#allocation2 + $0x1]]
        %s182 = sld [smem:[#allocation2 + $0x2]]
        %s183 = sld [smem:[#allocation2 + $0x3]]
        %s184 = sld [smem:[#allocation2 + $0x4]]
        %s185 = sld [smem:[#allocation2 + $0x5]]
        %s186 = sld [smem:[#allocation2 + $0x6]]
        %s187 = sld [smem:[#allocation2 + $0x7]]
        %s188 = sld [smem:[#allocation2 + $0x8]]
        %v189 = vld [vmem:[%s175] sm:$0x3]
        %v190 = vstv %s186
        %v191 = vmul.f32 %v190, %v189
        %v192 = vstv %s187
        %v193 = vmul.f32 %v192, %v189
        %v195 = vrot.slane %v193, 1
        %v197 = vadd.f32 %v191, %v195
        %v198 = vstv %s188
        %v199 = vadd.f32 %v197, %v198
        %v200 = vrcp.pop %v199
        %v201 = vmul.f32 1.0, %v200
        %v202 = vstv %s180
        %v203 = vmul.f32 %v202, %v189
        %v204 = vstv %s181
        %v205 = vmul.f32 %v204, %v189
        %v207 = vrot.slane %v205, 1
        %v209 = vadd.f32 %v203, %v207
        %v210 = vstv %s182
        %v211 = vadd.f32 %v209, %v210
        %v212 = vmul.f32 %v211, %v201
        %v213 = vadd.f32 %v212, 7.5
        %v214 = vstv %s183
        %v215 = vmul.f32 %v214, %v189
        %v216 = vstv %s184
        %v217 = vmul.f32 %v216, %v189
        %v219 = vrot.slane %v217, 1
        %v221 = vadd.f32 %v215, %v219
        %v222 = vstv %s185
        %v223 = vadd.f32 %v221, %v222
        %v224 = vmul.f32 %v223, %v201
        %v225 = vadd.f32 %v224, 7.5
        %v226 = vlaneseq
        %v227 = vshrl.u32 %v226, 7
        %v228 = vadd.s32 %v227, 8
        %v229 = vcvt.s32.f32 %v227
        %v230 = vcvt.s32.f32 %v228
        %v231 = vlaneseq
        %v232 = vshrl.u32 %v231, 7
        %v233 = vsub.s32 0, %v232
        %v234 = vrot.slane %v213, %v233
        %v235 = vsub.f32 %v229, %v234
        %v236 = vsub.f32 %v230, %v234
        %v237 = vand.u32 2147483647, %v235
        %v238 = vand.u32 2147483647, %v236
        %v239 = vsub.f32 1.0, %v237
        %v240 = vsub.f32 1.0, %v238
        %v241 = vmax.f32 %v239, 0.0
        %v242 = vmax.f32 %v240, 0.0
        %v243 = vlaneseq
        %v244 = vshrl.u32 %v243, 7
        %v245 = vsub.s32 0, %v244
        %v246 = vrot.slane %v225, %v245
        %v247 = vsub.f32 %v229, %v246
        %v248 = vsub.f32 %v230, %v246
        %v249 = vand.u32 2147483647, %v247
        %v250 = vand.u32 2147483647, %v248
        %v251 = vsub.f32 1.0, %v249
        %v252 = vsub.f32 1.0, %v250
        %v253 = vmax.f32 %v251, 0.0
        %v254 = vmax.f32 %v252, 0.0
        %v255 = vld [vmem:[%s2] sm:$0xff]
        %v256 = vld [vmem:[%s2 + $0x8] sm:$0xff]
        %v257 = vld [vmem:[%s2 + $0x10] sm:$0xff]
        %v258 = vld [vmem:[%s2 + $0x18] sm:$0xff]
        %v259 = vld [vmem:[%s2 + $0x20] sm:$0xff]
        %v260 = vld [vmem:[%s2 + $0x28] sm:$0xff]
        %vm261 = vcmask 130048
        %v263 = vsel %vm261, %v255, 0
        %v266 = vsel %vm261, %v256, 0
        %v269 = vsel %vm261, %v257, 0
        %v272 = vsel %vm261, %v258, 0
        %v275 = vsel %vm261, %v259, 0
        %v278 = vsel %vm261, %v260, 0
        %280 = vmatprep.subr.mxu0 0.0
        %281 = vmatpush1.msra.mxu0 0.0
        %282 = vmatprep.subr.mxu0 0.0
        %283 = vmatpush1.msra.mxu0 0.0
        %284 = vmatprep.subr.mxu0 0.0
        %285 = vmatpush1.msra.mxu0 0.0
        %286 = vmatprep.subr.mxu0 0.0
        %287 = vmatpush1.msra.mxu0 0.0
        %288 = vmatprep.subr.mxu0 0.0
        %289 = vmatpush1.msra.mxu0 0.0
        %290 = vmatprep.subr.mxu0 0.0
        %291 = vmatpush1.msra.mxu0 0.0
        %292 = vmatprep.subr.mxu0 0.0
        %293 = vmatpush1.msra.mxu0 0.0
        %294 = vmatprep.subr.mxu0 0.0
        %295 = vmatpush1.msra.mxu0 0.0
        %296 = vmatprep.subr.mxu0 0.0
        %297 = vmatpush1.msra.mxu0 0.0
        %298 = vmatprep.subr.mxu0 0.0
        %299 = vmatpush1.msra.mxu0 0.0
        %300 = vmatprep.subr.mxu0 0.0
        %301 = vmatpush1.msra.mxu0 0.0
        %302 = vmatprep.subr.mxu0 0.0
        %303 = vmatpush1.msra.mxu0 0.0
        %304 = vmatprep.subr.mxu0 0.0
        %305 = vmatpush1.msra.mxu0 0.0
        %306 = vmatprep.subr.mxu0 0.0
        %307 = vmatpush1.msra.mxu0 0.0
        %308 = vmatprep.subr.mxu0 0.0
        %309 = vmatpush1.msra.mxu0 %v242
        %310 = vmatprep.subr.mxu0 0.0
        %311 = vmatpush1.msra.mxu0 %v241
        %312 = vmatprep.subr.mxu0 0.0
        %313 = vmatpush2.msra.mxu0 0.0
        %314 = vmatprep.subr.mxu0 0.0
        %315 = vmatpush2.msra.mxu0 0.0
        %316 = vmatprep.subr.mxu0 0.0
        %317 = vmatpush2.msra.mxu0 0.0
        %318 = vmatprep.subr.mxu0 0.0
        %319 = vmatpush2.msra.mxu0 0.0
        %320 = vmatprep.subr.mxu0 0.0
        %321 = vmatpush2.msra.mxu0 0.0
        %322 = vmatprep.subr.mxu0 0.0
        %323 = vmatpush2.msra.mxu0 0.0
        %324 = vmatprep.subr.mxu0 0.0
        %325 = vmatpush2.msra.mxu0 0.0
        %326 = vmatprep.subr.mxu0 0.0
        %327 = vmatpush2.msra.mxu0 0.0
        %328 = vmatprep.subr.mxu0 0.0
        %329 = vmatpush2.msra.mxu0 0.0
        %330 = vmatprep.subr.mxu0 0.0
        %331 = vmatpush2.msra.mxu0 0.0
        %332 = vmatprep.subr.mxu0 0.0
        %333 = vmatpush2.msra.mxu0 0.0
        %334 = vmatprep.subr.mxu0 0.0
        %335 = vmatpush2.msra.mxu0 0.0
        %336 = vmatprep.subr.mxu0 0.0
        %337 = vmatpush2.msra.mxu0 0.0
        %338 = vmatprep.subr.mxu0 0.0
        %339 = vmatpush2.msra.mxu0 0.0
        %340 = vmatprep.subr.mxu0 0.0
        %341 = vmatpush2.msra.mxu0 0.0
        %342 = vmatprep.subr.mxu0 0.0
        %343 = vmatpush2.msra.mxu0 0.0
        %344 = vmatprep.mubr.f32.mxu0 0.0
        %345 = vmatmul.mubr.f32.gmra.mxu0 %v263
        %v346 = vpop.f32.mrf.mxu0
        %v347 = vadd.f32 0.0, %v346
        %v348 = vpop.f32.mrf.mxu0
        %349 = vmatprep.mubr.f32.mxu0 0.0
        %350 = vmatmul.mubr.f32.gmra.mxu0 %v266
        %v351 = vpop.f32.mrf.mxu0
        %v352 = vadd.f32 0.0, %v351
        %v353 = vpop.f32.mrf.mxu0
        %354 = vmatprep.mubr.f32.mxu0 0.0
        %355 = vmatmul.mubr.f32.gmra.mxu0 %v269
        %v356 = vpop.f32.mrf.mxu0
        %v357 = vadd.f32 0.0, %v356
        %v358 = vpop.f32.mrf.mxu0
        %359 = vmatprep.mubr.f32.mxu0 0.0
        %360 = vmatmul.mubr.f32.gmra.mxu0 %v272
        %v361 = vpop.f32.mrf.mxu0
        %v362 = vadd.f32 0.0, %v361
        %v363 = vpop.f32.mrf.mxu0
        %364 = vmatprep.mubr.f32.mxu0 0.0
        %365 = vmatmul.mubr.f32.gmra.mxu0 %v275
        %v366 = vpop.f32.mrf.mxu0
        %v367 = vadd.f32 0.0, %v366
        %v368 = vpop.f32.mrf.mxu0
        %369 = vmatprep.mubr.f32.mxu0 0.0
        %370 = vmatmul.mubr.f32.gmra.mxu0 %v278
        %v371 = vpop.f32.mrf.mxu0
        %v372 = vadd.f32 0.0, %v371
        %v373 = vpop.f32.mrf.mxu0
        %374 = vdwg.mxu0
        %v375 = vmul.f32 %v347, %v253
        %v376 = vmul.f32 %v352, %v254
        %v377 = vadd.f32 %v375, %v376
        %v378 = vrot.slane %v377, 4
        %v379 = vadd.f32 %v377, %v378
        %v380 = vrot.slane %v379, 2
        %v381 = vadd.f32 %v379, %v380
        %v382 = vrot.slane %v381, 1
        %v383 = vadd.f32 %v381, %v382
        %384 = vst [vmem:[%s179] sm:$0x1] %v383
        %v385 = vmul.f32 %v357, %v253
        %v386 = vmul.f32 %v362, %v254
        %v387 = vadd.f32 %v385, %v386
        %v388 = vrot.slane %v387, 4
        %v389 = vadd.f32 %v387, %v388
        %v390 = vrot.slane %v389, 2
        %v391 = vadd.f32 %v389, %v390
        %v392 = vrot.slane %v391, 1
        %v393 = vadd.f32 %v391, %v392
        %394 = vst [vmem:[%s179 + $0x1] sm:$0x1] %v393
        %v395 = vmul.f32 %v367, %v253
        %v396 = vmul.f32 %v372, %v254
        %v397 = vadd.f32 %v395, %v396
        %v398 = vrot.slane %v397, 4
        %v399 = vadd.f32 %v397, %v398
        %v400 = vrot.slane %v399, 2
        %v401 = vadd.f32 %v399, %v400
        %v402 = vrot.slane %v401, 1
        %v403 = vadd.f32 %v401, %v402
        %404 = vst [vmem:[%s179 + $0x2] sm:$0x1] %v403
        %p405 = scmp.lt.s32.totalorder %s15, 1
        %s406 = scalar_select %p405, %s15, 1
        %s407 = smul.addr %s406, 4
        %s408 = scalar_lea.vmem %s3, %s407
        // Predicated region
        $region37: #{homography_forward.1} parent=31 // pred_check
          %p409 = pneg %p101
        $region38: #{homography_forward.1} parent=31 // pred_check_branch
          %411 = sbr.rel (%p409) target = $region40
        $region39: #{homography_forward.1} parent=31 // pred_region
          _
        $region40: #{homography_forward.1} parent=31 // pred_fallthru
          _
      $region32: #{homography_forward.1} parent=5 // pred_fallthru
        _
      %p412 = scmp.le.s32.totalorder 2, %s10
      // Predicated region
      $region41: #{homography_forward.1} parent=5 // pred_check
        %p413 = pneg %p412
      $region42: #{homography_forward.1} parent=5 // pred_check_branch
        %415 = sbr.rel (%p413) target = $region44
      $region43: #{homography_forward.1} parent=5 // pred_region
        %s416 = ssub.s32 %s10, 2
        // Predicated region
        $region45: #{homography_forward.1} parent=43 // pred_check
          %p417 = pneg %p107
        $region46: #{homography_forward.1} parent=43 // pred_check_branch
          %419 = sbr.rel (%p417) target = $region48
        $region47: #{homography_forward.1} parent=43 // pred_region
          %p420 = scmp.lt.s32.totalorder %s16, 1
          %s421 = scalar_select %p420, %s16, 1
          %s422 = smul.addr %s421, 4
          %s423 = scalar_lea.vmem %s3, %s422
        $region48: #{homography_forward.1} parent=43 // pred_fallthru
          _
      $region44: #{homography_forward.1} parent=5 // pred_fallthru
        _
    $region6: #{homography_forward.1} parent=1 // loop_footer
      %s14 = sadd.s32 1, %s10
    $region7: #{homography_forward.1} parent=1 // loop_footer_branch
      %9 = sbr.rel target = $region3
    $region8: #{homography_forward.1} parent=1 // loop_exit
      _
    %424 = vsyncpa [#allocation3], 1
    %s425 = scalar_lea.sflag [#allocation3], 1
    %426 = vsyncpa %s425, 1

</llo_original>
